<compile_context>
chip_gen: v5e
topology: v5e:2x2
jax: 0.10.0
libtpu: 0.0.40
codegen_flags: <defaults>
</compile_context>

<pallas_src>
import functools

import jax
import jax.numpy as jnp
from jax.experimental import pallas as pl
from jax.experimental.pallas import tpu as pltpu


# ------------------------------------------------------------------ helpers ---

def _round_up(x, m):
    return (x + m - 1) // m * m


def _resident_spec(shape):
    """Grid-invariant (weight/bias) spec; single-buffered to halve resident VMEM."""
    try:
        return pl.BlockSpec(shape, lambda i: (0, 0), pipeline_mode=pl.Buffered(1))
    except (TypeError, AttributeError):
        # Older Pallas without pipeline_mode: fall back to default (double) buffering.
        return pl.BlockSpec(shape, lambda i: (0, 0))


# ------------------------------------------------------------------- kernel ---

def _made_fused_kernel(x_ref, *refs, n_layers):
    """Fused MADE forward on one batch tile.

    x_ref: (tile_n, in_dim)      activation tile (f32)
    refs : (w_0, b_0, ..., w_{L-1}, b_{L-1}, o_ref)
      w_l: (in_f, out_f[_pad])   pre-masked, pre-transposed bf16 weight (VMEM-resident)
      b_l: (1, out_f[_pad])      f32 bias
    o_ref: (tile_n, out_pad)     output tile (f32, lane-dense)
    """
    o_ref = refs[-1]
    act = x_ref[...]
    for l in range(n_layers):
        w = refs[2 * l][...]          # bf16
        b = refs[2 * l + 1][...]      # f32
        act = jnp.dot(act.astype(w.dtype), w,
                      preferred_element_type=jnp.float32) + b        # MXU + VPU
        if l < n_layers - 1:
            # sigmoid(x) = 0.5*tanh(0.5*x) + 0.5 : one EUP op instead of exp+divide.
            act = 0.5 * jnp.tanh(0.5 * act) + 0.5
    o_ref[...] = act.astype(o_ref.dtype)


# --------------------------------------------------------------- weight prep ---

def prepare_made_weights(params, masks, n_class):
    """One-time prep: mask, transpose to (in_f, out_f), bf16-cast, and for the final
    layer fold the 'n (p a) -> n (a p)' output permutation into the column order and
    zero-pad only the output/lane dim to a multiple of 128 (lane-dense stores).

    Zero padding is exact: padded output columns have zero weights and zero bias and
    are sliced away after the kernel. K dims are NOT padded (full-array blocks are
    exempt from the (8,128) rule; the MXU pads K internally).
    """
    n_layers = len(params)
    prepared = []
    for idx, ((w, b), m) in enumerate(zip(params, masks)):
        wm = (w * m).T.astype(jnp.float32)            # (in_f, out_f)
        bm = b.astype(jnp.float32)
        in_f, out_f = wm.shape
        if idx == n_layers - 1:
            in_dim = out_f // n_class
            # new column j' = a*in_dim + p  takes old column  p*n_class + a
            src = jnp.arange(out_f).reshape(in_dim, n_class).T.reshape(-1)
            wm = wm[:, src]
            bm = bm[src]
            out_p = _round_up(out_f, 128)             # lane-dense final store
            wm = jnp.zeros((in_f, out_p), jnp.float32).at[:, :out_f].set(wm)
            bm = jnp.zeros((out_p,), jnp.float32).at[:out_f].set(bm)
        prepared.append((wm.astype(jnp.bfloat16), bm.reshape(1, -1)))
    return prepared


# ------------------------------------------------------------------ forward ---

@functools.partial(jax.jit, static_argnames=("n_class",))
def made_forward(x, prepared, n_class):
    """x: (N, C, H, W) f32 -> (N, n_class, C, H, W). `prepared` from prepare_made_weights."""
    n, c, h, w = x.shape
    in_dim = c * h * w
    out_dim = in_dim * n_class
    n_layers = len(prepared)
    out_pad = prepared[-1][0].shape[1]

    # Batch tiling: small batches -> one full-array tile (no wrapper-side pad);
    # large batches -> 128-row tiles (fits v7x's 64 MiB/TC next to resident weights,
    # fine on v5e/v6e). Grid axis "parallel" -> megacore batch sharding on v7x.
    if n <= 128:
        tile_n, n_pad = n, n
    else:
        tile_n = 128
        n_pad = _round_up(n, tile_n)

    flat = x.reshape(n, in_dim)
    if n_pad != n:
        flat = jnp.pad(flat, ((0, n_pad - n), (0, 0)))   # only the ragged remainder

    in_specs = [pl.BlockSpec((tile_n, in_dim), lambda i: (i, 0))]
    args = [flat]
    for wp, bp in prepared:
        in_specs.append(_resident_spec(wp.shape))        # weight resident, 1-buffered
        in_specs.append(_resident_spec(bp.shape))        # bias resident, 1-buffered
        args.extend([wp, bp])

    # Explicit VMEM budget: weights+biases (x2 safety margin in case single-buffering
    # is unavailable) + double-buffered in/out tiles + activation temporaries.
    weight_bytes = sum(int(wp.size) * wp.dtype.itemsize +
                       int(bp.size) * bp.dtype.itemsize for wp, bp in prepared)
    act_cols = max(int(wp.shape[1]) for wp, _ in prepared)
    tile_bytes = (2 * tile_n * in_dim * 4
                  + 2 * tile_n * out_pad * 4
                  + 4 * tile_n * act_cols * 4)
    vmem_limit = int(min(max(1.5 * (2 * weight_bytes + tile_bytes), 32 * 2 ** 20),
                         64 * 2 ** 20))

    kern = functools.partial(_made_fused_kernel, n_layers=n_layers)
    out = pl.pallas_call(
        kern,
        out_shape=jax.ShapeDtypeStruct((n_pad, out_pad), jnp.float32),
        grid=(n_pad // tile_n,),
        in_specs=in_specs,
        out_specs=pl.BlockSpec((tile_n, out_pad), lambda i: (i, 0)),
        compiler_params=pltpu.CompilerParams(
            dimension_semantics=("parallel",),
            vmem_limit_bytes=vmem_limit),
    )(*args)

    out = out[:n, :out_dim]
    # Columns are already n_class-major (permutation folded into the last weight),
    # so PyTorch's 'n (c h w a) -> n a c h w' rearrange is a free reshape.
    return out.reshape(n, n_class, c, h, w)


# ---------------------------------------------------------- params and masks ---

def init_made_params(key, in_dim, hidden_dim, n_class, n_layer):
    """Deterministic parameter init matching the nn.Linear shapes of MADENet."""
    dims = [in_dim] + [hidden_dim] * n_layer + [in_dim * n_class]
    params = []
    for in_f, out_f in zip(dims[:-1], dims[1:]):
        key, kw, kb = jax.random.split(key, 3)
        bound = 1.0 / jnp.sqrt(in_f)
        w = jax.random.uniform(kw, (out_f, in_f), jnp.float32, -bound, bound)
        b = jax.random.uniform(kb, (out_f,), jnp.float32, -bound, bound)
        params.append((w, b))
    return params


def build_made_masks(key, in_dim, hidden_dim, n_class, n_layer):
    """Replicates MADENet.reset_mask with deterministic JAX randomness (init-time only)."""
    high = in_dim
    low = jnp.int32(0)
    data_unit = jnp.arange(0, high, dtype=jnp.int32)
    units = [data_unit]
    for _ in range(n_layer):
        key, sub = jax.random.split(key)
        hidden_unit = jax.random.randint(sub, (hidden_dim,), low, high, jnp.int32)
        units.append(hidden_unit)
        low = jnp.min(hidden_unit)        # init-time only
    # data_unit.unsqueeze(1).repeat(1, n_class).reshape(-1) - 1
    units.append(jnp.repeat(data_unit, n_class) - 1)
    masks = []
    for in_unit, out_unit in zip(units[:-1], units[1:]):
        masks.append((out_unit[:, None] >= in_unit[None, :]).astype(jnp.float32))
    return masks


# ---------------------------------------------------------------- reference ---

def made_forward_ref(x, params, masks, n_class):
    """Pure-JAX f32 reference for verification."""
    n, c, h, w = x.shape
    flat = x.reshape(n, c * h * w)
    for (wt, b), m in zip(params[:-1], masks[:-1]):
        flat = jax.nn.sigmoid(flat @ (wt * m).T + b)
    wt, b = params[-1]
    flat = flat @ (wt * masks[-1]).T + b
    return flat.reshape(n, c, h, w, n_class).transpose(0, 4, 1, 2, 3)


# --------------------------------------------------------------------- main ---

if __name__ == "__main__":
    # Small shapes consistent with the module: in_dim = C*H*W.
    N, C, H, W = 2, 1, 4, 4
    in_dim = C * H * W          # 16
    hidden_dim = 32
    n_class = 4
    n_layer = 2

    key = jax.random.PRNGKey(0)
    k_x, k_p, k_m = jax.random.split(key, 3)

    x = jax.random.normal(k_x, (N, C, H, W), jnp.float32)
    params = init_made_params(k_p, in_dim, hidden_dim, n_class, n_layer)
    masks = build_made_masks(k_m, in_dim, hidden_dim, n_class, n_layer)

    prepared = prepare_made_weights(params, masks, n_class)   # one-time prep

    out = made_forward(x, prepared, n_class)
    out = jax.block_until_ready(out)

    ref = made_forward_ref(x, params, masks, n_class)
    assert out.shape == (N, n_class, C, H, W), out.shape
    # bf16 weights/activations inside the kernel -> looser tolerance vs the f32 ref.
    err = float(jnp.max(jnp.abs(out - ref)))
    assert jnp.allclose(out, ref, atol=2e-2, rtol=2e-2), f"mismatch vs reference: {err}"

    print("KERNEL_OK")
</pallas_src>

<mosaic_0001>
module attributes {stable_mosaic.version = 11 : i64} {
  func.func @_made_fused_kernel(%arg0: i32, %arg1: memref<2x16xf32, #tpu.memory_space<vmem>>, %arg2: memref<16x32xbf16, #tpu.memory_space<vmem>>, %arg3: memref<1x32xf32, #tpu.memory_space<vmem>>, %arg4: memref<32x32xbf16, #tpu.memory_space<vmem>>, %arg5: memref<1x32xf32, #tpu.memory_space<vmem>>, %arg6: memref<32x128xbf16, #tpu.memory_space<vmem>>, %arg7: memref<1x128xf32, #tpu.memory_space<vmem>>, %arg8: memref<2x128xf32, #tpu.memory_space<vmem>>) attributes {dimension_semantics = [#tpu.dimension_semantics<parallel>], iteration_bounds = array<i64: 1>, scalar_prefetch = 0 : i64, scratch_operands = 0 : i64, tpu.core_type = #tpu.core_type<tc>, window_params = [{transform_indices = @transform_0, window_bounds = array<i64: 2, 16>}, {pipeline_mode = #tpu.pipeline_mode<synchronous>, transform_indices = @transform_1, window_bounds = array<i64: 16, 32>}, {pipeline_mode = #tpu.pipeline_mode<synchronous>, transform_indices = @transform_2, window_bounds = array<i64: 1, 32>}, {pipeline_mode = #tpu.pipeline_mode<synchronous>, transform_indices = @transform_3, window_bounds = array<i64: 32, 32>}, {pipeline_mode = #tpu.pipeline_mode<synchronous>, transform_indices = @transform_4, window_bounds = array<i64: 1, 32>}, {pipeline_mode = #tpu.pipeline_mode<synchronous>, transform_indices = @transform_5, window_bounds = array<i64: 32, 128>}, {pipeline_mode = #tpu.pipeline_mode<synchronous>, transform_indices = @transform_6, window_bounds = array<i64: 1, 128>}, {transform_indices = @transform_7, window_bounds = array<i64: 2, 128>}]} {
    %c0 = arith.constant 0 : index
    %c0_0 = arith.constant 0 : index
    %0 = vector.load %arg1[%c0, %c0_0] : memref<2x16xf32, #tpu.memory_space<vmem>>, vector<2x16xf32>
    %c0_1 = arith.constant 0 : index
    %c0_2 = arith.constant 0 : index
    %1 = vector.load %arg2[%c0_1, %c0_2] : memref<16x32xbf16, #tpu.memory_space<vmem>>, vector<16x32xbf16>
    %c0_3 = arith.constant 0 : index
    %c0_4 = arith.constant 0 : index
    %2 = vector.load %arg3[%c0_3, %c0_4] : memref<1x32xf32, #tpu.memory_space<vmem>>, vector<1x32xf32>
    %3 = arith.truncf %0 : vector<2x16xf32> to vector<2x16xbf16>
    %cst = arith.constant dense<0.000000e+00> : vector<2x32xf32>
    %4 = tpu.matmul %3, %1, %cst {dimension_numbers = #tpu.dot_dimension_numbers<[1], [0], [0], [1], [0, 0, 1, 1], [], []>} : vector<2x16xbf16>, vector<16x32xbf16>, vector<2x32xf32> -> vector<2x32xf32>
    %5 = vector.broadcast %2 : vector<1x32xf32> to vector<2x32xf32>
    %6 = arith.addf %4, %5 : vector<2x32xf32>
    %cst_5 = arith.constant 5.000000e-01 : f32
    %7 = vector.broadcast %cst_5 : f32 to vector<2x32xf32>
    %8 = arith.mulf %7, %6 : vector<2x32xf32>
    %9 = math.tanh %8 : vector<2x32xf32>
    %cst_6 = arith.constant 5.000000e-01 : f32
    %10 = vector.broadcast %cst_6 : f32 to vector<2x32xf32>
    %11 = arith.mulf %10, %9 : vector<2x32xf32>
    %cst_7 = arith.constant 5.000000e-01 : f32
    %12 = vector.broadcast %cst_7 : f32 to vector<2x32xf32>
    %13 = arith.addf %11, %12 : vector<2x32xf32>
    %c0_8 = arith.constant 0 : index
    %c0_9 = arith.constant 0 : index
    %14 = vector.load %arg4[%c0_8, %c0_9] : memref<32x32xbf16, #tpu.memory_space<vmem>>, vector<32x32xbf16>
    %c0_10 = arith.constant 0 : index
    %c0_11 = arith.constant 0 : index
    %15 = vector.load %arg5[%c0_10, %c0_11] : memref<1x32xf32, #tpu.memory_space<vmem>>, vector<1x32xf32>
    %16 = arith.truncf %13 : vector<2x32xf32> to vector<2x32xbf16>
    %cst_12 = arith.constant dense<0.000000e+00> : vector<2x32xf32>
    %17 = tpu.matmul %16, %14, %cst_12 {dimension_numbers = #tpu.dot_dimension_numbers<[1], [0], [0], [1], [0, 0, 1, 1], [], []>} : vector<2x32xbf16>, vector<32x32xbf16>, vector<2x32xf32> -> vector<2x32xf32>
    %18 = vector.broadcast %15 : vector<1x32xf32> to vector<2x32xf32>
    %19 = arith.addf %17, %18 : vector<2x32xf32>
    %cst_13 = arith.constant 5.000000e-01 : f32
    %20 = vector.broadcast %cst_13 : f32 to vector<2x32xf32>
    %21 = arith.mulf %20, %19 : vector<2x32xf32>
    %22 = math.tanh %21 : vector<2x32xf32>
    %cst_14 = arith.constant 5.000000e-01 : f32
    %23 = vector.broadcast %cst_14 : f32 to vector<2x32xf32>
    %24 = arith.mulf %23, %22 : vector<2x32xf32>
    %cst_15 = arith.constant 5.000000e-01 : f32
    %25 = vector.broadcast %cst_15 : f32 to vector<2x32xf32>
    %26 = arith.addf %24, %25 : vector<2x32xf32>
    %c0_16 = arith.constant 0 : index
    %c0_17 = arith.constant 0 : index
    %27 = vector.load %arg6[%c0_16, %c0_17] : memref<32x128xbf16, #tpu.memory_space<vmem>>, vector<32x128xbf16>
    %c0_18 = arith.constant 0 : index
    %c0_19 = arith.constant 0 : index
    %28 = vector.load %arg7[%c0_18, %c0_19] : memref<1x128xf32, #tpu.memory_space<vmem>>, vector<1x128xf32>
    %29 = arith.truncf %26 : vector<2x32xf32> to vector<2x32xbf16>
    %cst_20 = arith.constant dense<0.000000e+00> : vector<2x128xf32>
    %30 = tpu.matmul %29, %27, %cst_20 {dimension_numbers = #tpu.dot_dimension_numbers<[1], [0], [0], [1], [0, 0, 1, 1], [], []>} : vector<2x32xbf16>, vector<32x128xbf16>, vector<2x128xf32> -> vector<2x128xf32>
    %31 = vector.broadcast %28 : vector<1x128xf32> to vector<2x128xf32>
    %32 = arith.addf %30, %31 : vector<2x128xf32>
    %c0_21 = arith.constant 0 : index
    %c0_22 = arith.constant 0 : index
    %33 = vector.load %arg8[%c0_21, %c0_22] : memref<2x128xf32, #tpu.memory_space<vmem>>, vector<2x128xf32>
    tpu.vector_store %arg8[%c0_21, %c0_22], %32 {strides = array<i32>} : memref<2x128xf32, #tpu.memory_space<vmem>>, vector<2x128xf32>,
    return
  }
  func.func @transform_0(%arg0: i32) -> (i32, i32) {
    %c0_i32 = arith.constant 0 : i32
    %c0_i32_0 = arith.constant 0 : i32
    return %arg0, %c0_i32 : i32, i32
  }
  func.func @transform_1(%arg0: i32) -> (i32, i32) {
    %c0_i32 = arith.constant 0 : i32
    %c0_i32_0 = arith.constant 0 : i32
    %c0_i32_1 = arith.constant 0 : i32
    return %c0_i32, %c0_i32_0 : i32, i32
  }
  func.func @transform_2(%arg0: i32) -> (i32, i32) {
    %c0_i32 = arith.constant 0 : i32
    %c0_i32_0 = arith.constant 0 : i32
    %c0_i32_1 = arith.constant 0 : i32
    return %c0_i32, %c0_i32_0 : i32, i32
  }
  func.func @transform_3(%arg0: i32) -> (i32, i32) {
    %c0_i32 = arith.constant 0 : i32
    %c0_i32_0 = arith.constant 0 : i32
    %c0_i32_1 = arith.constant 0 : i32
    return %c0_i32, %c0_i32_0 : i32, i32
  }
  func.func @transform_4(%arg0: i32) -> (i32, i32) {
    %c0_i32 = arith.constant 0 : i32
    %c0_i32_0 = arith.constant 0 : i32
    %c0_i32_1 = arith.constant 0 : i32
    return %c0_i32, %c0_i32_0 : i32, i32
  }
  func.func @transform_5(%arg0: i32) -> (i32, i32) {
    %c0_i32 = arith.constant 0 : i32
    %c0_i32_0 = arith.constant 0 : i32
    %c0_i32_1 = arith.constant 0 : i32
    return %c0_i32, %c0_i32_0 : i32, i32
  }
  func.func @transform_6(%arg0: i32) -> (i32, i32) {
    %c0_i32 = arith.constant 0 : i32
    %c0_i32_0 = arith.constant 0 : i32
    %c0_i32_1 = arith.constant 0 : i32
    return %c0_i32, %c0_i32_0 : i32, i32
  }
  func.func @transform_7(%arg0: i32) -> (i32, i32) {
    %c0_i32 = arith.constant 0 : i32
    %c0_i32_0 = arith.constant 0 : i32
    return %arg0, %c0_i32 : i32, i32
  }
}

</mosaic_0001>

<llo_original>
// kernel: made_forward.1
$region0: #{made_forward.1}
  #allocation0 [shape = 'u32[]', space=smem, size = 0x4, offset = 0x4, fixed_abs, tag = 'smem constant byte address 0x4 - core index']
  #allocation1 [shape = 'u32[72,128]{1,0:T(1,128)}', space=vmem, size = 0x9000, scoped, tag = 'internal scratch']
  %s0 = inlined_call_operand.vmem [shape: f32[2,16], index: 0, kind: input, shape index: {}]
  %s1 = inlined_call_operand.vmem [shape: bf16[16,32], index: 1, kind: input, shape index: {}]
  %s2 = inlined_call_operand.vmem [shape: f32[1,32], index: 2, kind: input, shape index: {}]
  %s3 = inlined_call_operand.hbm [shape: bf16[32,32], index: 3, kind: input, shape index: {}]
  %s4 = inlined_call_operand.vmem [shape: f32[1,32], index: 4, kind: input, shape index: {}]
  %s5 = inlined_call_operand.hbm [shape: bf16[32,128], index: 5, kind: input, shape index: {}]
  %s6 = inlined_call_operand.vmem [shape: f32[1,128], index: 6, kind: input, shape index: {}]
  %s7 = inlined_call_operand.vmem [shape: f32[2,128], index: 7, kind: output, shape index: {}]
  %s8 = sld [smem:[#allocation0]]
  $region46: #{made_forward.1} parent=0
    _
  %s10 = ssub.s32 1, %s8
  %s11 = scalar_select 0, %s10, %s8
  $region1: #{made_forward.1} parent=0
    #allocation2 [shape = 'u8[8192]{0}', space=vmem, size = 0x2000, scoped, tag = 'input window, operand 3, single buffered']
    #allocation3 [shape = 's32[1]{0}', space=sflag, size = 0x4, scoped, tag = 'scoped memory for made_forward.1']
    #allocation4 [shape = 'u8[8192]{0}', space=vmem, size = 0x2000, scoped, tag = 'input window, operand 5, single buffered']
    #allocation5 [shape = 's32[1]{0}', space=sflag, size = 0x4, scoped, tag = 'scoped memory for made_forward.1']
    %12 = vsyncpa [#allocation3], 0
    %13 = vsyncpa [#allocation5], 0
    // Predicated region
    $region2: #{made_forward.1} parent=1 // pred_check
      _
    $region3: #{made_forward.1} parent=1 // pred_check_branch
      %15 = sbr.rel (0) target = $region5
    $region4: #{made_forward.1} parent=1 // pred_region
      _
    $region5: #{made_forward.1} parent=1 // pred_fallthru
      _
    // Predicated region
    $region6: #{made_forward.1} parent=1 // pred_check
      _
    $region7: #{made_forward.1} parent=1 // pred_check_branch
      %17 = sbr.rel (0) target = $region9
    $region8: #{made_forward.1} parent=1 // pred_region
      _
    $region9: #{made_forward.1} parent=1 // pred_fallthru
      _
    // Predicated region
    $region10: #{made_forward.1} parent=1 // pred_check
      _
    $region11: #{made_forward.1} parent=1 // pred_check_branch
      %19 = sbr.rel (0) target = $region13
    $region12: #{made_forward.1} parent=1 // pred_region
      _
    $region13: #{made_forward.1} parent=1 // pred_fallthru
      _
    // Predicated region
    $region14: #{made_forward.1} parent=1 // pred_check
      _
    $region15: #{made_forward.1} parent=1 // pred_check_branch
      %21 = sbr.rel (0) target = $region17
    $region16: #{made_forward.1} parent=1 // pred_region
      %23 = vsyncadd [#allocation3], 0
      %s24 = sshll.u32 %s3, 4
      %s25 = int_to_ptr.hbm [resolvable:$true] %s24
      %s26 = sshll.u32 [#allocation2], 4
      %s27 = int_to_ptr.vmem [resolvable:$true] %s26
      %32 = dma.hbm_to_vmem [thread:$0]  %s25, 256, %s27, [#allocation3], 64, 64, 4
    $region17: #{made_forward.1} parent=1 // pred_fallthru
      _
    // Predicated region
    $region18: #{made_forward.1} parent=1 // pred_check
      _
    $region19: #{made_forward.1} parent=1 // pred_check_branch
      %34 = sbr.rel (0) target = $region21
    $region20: #{made_forward.1} parent=1 // pred_region
      _
    $region21: #{made_forward.1} parent=1 // pred_fallthru
      _
    // Predicated region
    $region22: #{made_forward.1} parent=1 // pred_check
      _
    $region23: #{made_forward.1} parent=1 // pred_check_branch
      %36 = sbr.rel (0) target = $region25
    $region24: #{made_forward.1} parent=1 // pred_region
      %38 = vsyncadd [#allocation5], 0
      %s39 = sshll.u32 %s5, 4
      %s40 = int_to_ptr.hbm [resolvable:$true] %s39
      %s41 = sshll.u32 [#allocation4], 4
      %s42 = int_to_ptr.vmem [resolvable:$true] %s41
      %47 = dma.hbm_to_vmem [thread:$0]  %s40, 256, %s42, [#allocation5], 64, 64, 4
    $region25: #{made_forward.1} parent=1 // pred_fallthru
      _
    // Predicated region
    $region26: #{made_forward.1} parent=1 // pred_check
      _
    $region27: #{made_forward.1} parent=1 // pred_check_branch
      %49 = sbr.rel (0) target = $region29
    $region28: #{made_forward.1} parent=1 // pred_region
      _
    $region29: #{made_forward.1} parent=1 // pred_fallthru
      _
    // Predicated region
    $region30: #{made_forward.1} parent=1 // pred_check
      _
    $region31: #{made_forward.1} parent=1 // pred_check_branch
      %51 = sbr.rel (0) target = $region33
    $region32: #{made_forward.1} parent=1 // pred_region
      %53 = dma.done [#allocation3], 256
    $region33: #{made_forward.1} parent=1 // pred_fallthru
      _
    // Predicated region
    $region34: #{made_forward.1} parent=1 // pred_check
      _
    $region35: #{made_forward.1} parent=1 // pred_check_branch
      %55 = sbr.rel (0) target = $region37
    $region36: #{made_forward.1} parent=1 // pred_region
      %57 = dma.done [#allocation5], 256
    $region37: #{made_forward.1} parent=1 // pred_fallthru
      _
    %v59 = vld [vmem:[%s0] sm:$0x3]
    %v60 = vld [vmem:[%s1] sm:$0xf]
    %v61 = vld [vmem:[%s1 + $0x4] sm:$0xf]
    %v62 = vld [vmem:[%s2] sm:$0x1]
    %v63 = vpack.c.bf16 %v59, %v59
    %v65 = vperm.slane %v62, 0
    %v69 = vunpack.c.l.b16 %v60
    %v70 = vunpack.c.l.b16 %v61
    %v71 = vpack.c.b16 %v70, %v69
    %vm73 = vcmask 130048
    %v75 = vsel %vm73, %v63, 0
    %77 = vmatpush.bf16.msra.mxu0 0
    %78 = vmatpush.bf16.msra.mxu0 0
    %79 = vmatpush.bf16.msra.mxu0 0
    %80 = vmatpush.bf16.msra.mxu0 0
    %81 = vmatpush.bf16.msra.mxu0 0
    %82 = vmatpush.bf16.msra.mxu0 0
    %83 = vmatpush.bf16.msra.mxu0 0
    %84 = vmatpush.bf16.msra.mxu0 %v71
    %85 = vmatmul.bf16.gmra.mxu0 %v75
    %v86 = vpop.f32.mrf.mxu0
    %v87 = vadd.f32 %v65, %v86
    %v88 = vpop.f32.mrf.mxu0
    %89 = vdwg.mxu0
    %v90 = vmul.f32 %v87, 0.5
    %v91 = vtanh.pop %v90
    %v92 = vmul.f32 %v91, 0.5
    %v93 = vadd.f32 %v92, 0.5
    %v94 = vld [vmem:[#allocation2] sm:$0xf]
    %v95 = vld [vmem:[#allocation2 + $0x4] sm:$0xf]
    %v96 = vld [vmem:[#allocation2 + $0x8] sm:$0xf]
    %v97 = vld [vmem:[#allocation2 + $0xc] sm:$0xf]
    %v98 = vld [vmem:[%s4] sm:$0x1]
    %v99 = vpack.c.bf16 %v93, %v93
    %v101 = vperm.slane %v98, 0
    %v107 = vunpack.c.l.b16 %v94
    %v108 = vunpack.c.l.b16 %v95
    %v109 = vunpack.c.l.b16 %v96
    %v110 = vunpack.c.l.b16 %v97
    %v111 = vpack.c.b16 %v108, %v107
    %v112 = vpack.c.b16 %v110, %v109
    %vm115 = vcmask 261120
    %v117 = vsel %vm115, %v99, 0
    %119 = vmatpush.bf16.msra.mxu0 0
    %120 = vmatpush.bf16.msra.mxu0 0
    %121 = vmatpush.bf16.msra.mxu0 0
    %122 = vmatpush.bf16.msra.mxu0 0
    %123 = vmatpush.bf16.msra.mxu0 0
    %124 = vmatpush.bf16.msra.mxu0 0
    %125 = vmatpush.bf16.msra.mxu0 %v112
    %126 = vmatpush.bf16.msra.mxu0 %v111
    %127 = vmatmul.bf16.gmra.mxu0 %v117
    %v128 = vpop.f32.mrf.mxu0
    %v129 = vadd.f32 %v101, %v128
    %v130 = vpop.f32.mrf.mxu0
    %131 = vdwg.mxu0
    %v132 = vmul.f32 %v129, 0.5
    %v133 = vtanh.pop %v132
    %v134 = vmul.f32 %v133, 0.5
    %v135 = vadd.f32 %v134, 0.5
    %v136 = vld [vmem:[#allocation4] sm:$0xf]
    %v137 = vld [vmem:[#allocation4 + $0x4] sm:$0xf]
    %v138 = vld [vmem:[#allocation4 + $0x8] sm:$0xf]
    %v139 = vld [vmem:[#allocation4 + $0xc] sm:$0xf]
    %v140 = vld [vmem:[%s6] sm:$0x1]
    %v141 = vpack.c.bf16 %v135, %v135
    %v143 = vperm.slane %v140, 0
    %v149 = vunpack.c.l.b16 %v136
    %v150 = vunpack.c.l.b16 %v137
    %v151 = vunpack.c.l.b16 %v138
    %v152 = vunpack.c.l.b16 %v139
    %v153 = vpack.c.b16 %v150, %v149
    %v154 = vpack.c.b16 %v152, %v151
    %v158 = vsel %vm115, %v141, 0
    %160 = vmatpush.bf16.msra.mxu0 0
    %161 = vmatpush.bf16.msra.mxu0 0
    %162 = vmatpush.bf16.msra.mxu0 0
    %163 = vmatpush.bf16.msra.mxu0 0
    %164 = vmatpush.bf16.msra.mxu0 0
    %165 = vmatpush.bf16.msra.mxu0 0
    %166 = vmatpush.bf16.msra.mxu0 %v154
    %167 = vmatpush.bf16.msra.mxu0 %v153
    %168 = vmatmul.bf16.gmra.mxu0 %v158
    %v169 = vpop.f32.mrf.mxu0
    %v170 = vadd.f32 %v143, %v169
    %v171 = vpop.f32.mrf.mxu0
    %172 = vdwg.mxu0
    %173 = vst [vmem:[%s7] sm:$0x3] %v170
    // Predicated region
    $region38: #{made_forward.1} parent=1 // pred_check
      _
    $region39: #{made_forward.1} parent=1 // pred_check_branch
      %175 = sbr.rel (0) target = $region41
    $region40: #{made_forward.1} parent=1 // pred_region
      _
    $region41: #{made_forward.1} parent=1 // pred_fallthru
      _
    // Predicated region
    $region42: #{made_forward.1} parent=1 // pred_check
      _
    $region43: #{made_forward.1} parent=1 // pred_check_branch
      %177 = sbr.rel (0) target = $region45
    $region44: #{made_forward.1} parent=1 // pred_region
      _
    $region45: #{made_forward.1} parent=1 // pred_fallthru
      _
    %178 = vsyncpa [#allocation3], 1
    %179 = vsyncpa [#allocation5], 1

</llo_original>
